<compile_context>
chip_gen: v6e
topology: v6e:2x2x1
jax: 0.10.0
libtpu: 0.0.40
codegen_flags: <defaults>
</compile_context>

<pallas_src>
import functools

import jax
import jax.numpy as jnp
from jax.experimental import pallas as pl
from jax.experimental.pallas import tpu as pltpu


def _round_up(x, m):
    return ((x + m - 1) // m) * m


def _qnet_kernel(x_ref, w1_ref, b1_ref, w2_ref, b2_ref, wh_ref, bh_ref,
                 v_ref, a_ref, *, v_cols):
    """3 MXU matmuls (fused V/A head); bias + ReLU on the f32 accumulator (VPU)."""
    x = x_ref[...].astype(w1_ref.dtype)
    p1 = jnp.dot(x, w1_ref[...], preferred_element_type=jnp.float32) + b1_ref[...]
    p1 = jnp.maximum(p1, 0.0)
    p2 = jnp.dot(p1.astype(w2_ref.dtype), w2_ref[...],
                 preferred_element_type=jnp.float32) + b2_ref[...]
    p2 = jnp.maximum(p2, 0.0)
    head = jnp.dot(p2.astype(wh_ref.dtype), wh_ref[...],
                   preferred_element_type=jnp.float32) + bh_ref[...]
    # head is an in-VMEM intermediate only; store just the real columns to HBM.
    n_act = a_ref.shape[-1]
    v_ref[...] = head[:, :1].astype(v_ref.dtype)                       # lane 0 of group 0
    a_ref[...] = head[:, v_cols:v_cols + n_act].astype(a_ref.dtype)    # lanes 0.. of group 1


def prepare_params(params, compute_dtype=jnp.float32):
    """One-time conversion of PyTorch-layout params ((out,in) weights, (out,) biases)
    into kernel layout: transposed to (in,out), zero-padded to lane-full widths,
    V/A heads fused into one weight (V lane group, then A lane group).
    Use compute_dtype=bf16 on v5e/v6e/v7x for the MXU-native fast path."""
    def pad2(a, rows, cols, dtype):
        buf = jnp.zeros((rows, cols), dtype)
        return buf.at[: a.shape[0], : a.shape[1]].set(a.astype(dtype))

    in_dim = params["l1_w"].shape[1]
    h2 = params["l1_w"].shape[0]
    hidden = params["l2_w"].shape[0]
    actions = params["A_w"].shape[0]

    H2P = _round_up(h2, 128)
    HP = _round_up(hidden, 128)
    VP = 128                          # padded V lane group
    AP = _round_up(actions, 128)      # padded A lane group

    w1 = pad2(params["l1_w"].T, in_dim, H2P, compute_dtype)
    b1 = pad2(params["l1_b"][None, :], 1, H2P, jnp.float32)
    w2 = pad2(params["l2_w"].T, H2P, HP, compute_dtype)
    b2 = pad2(params["l2_b"][None, :], 1, HP, jnp.float32)

    # Fused head: lane group 0 -> V (col 0), lane group 1 -> A (cols 0..actions-1).
    wh = jnp.zeros((HP, VP + AP), compute_dtype)
    wh = wh.at[:hidden, 0:1].set(params["V_w"].T.astype(compute_dtype))
    wh = wh.at[:hidden, VP:VP + actions].set(params["A_w"].T.astype(compute_dtype))
    bh = jnp.zeros((1, VP + AP), jnp.float32)
    bh = bh.at[0, 0:1].set(params["V_b"].astype(jnp.float32))
    bh = bh.at[0, VP:VP + actions].set(params["A_b"].astype(jnp.float32))

    return dict(w1=w1, b1=b1, w2=w2, b2=b2, w_head=wh, b_head=bh,
                in_dim=in_dim, actions=actions, v_cols=VP)


def _choose_tile(batch, tile_m):
    """Pick (TM, padded_B, grid): TM is a multiple of 8 that divides
    round_up(batch, 8) (so batch padding is at most 7 rows), TM <= tile_m,
    and there are >= 2 grid steps whenever possible (v7x has 2 TensorCores)."""
    if batch < 16:
        return batch, batch, 1        # single full-array tile; no padding needed
    bp = _round_up(batch, 8)
    tm = max(8, min(_round_up(tile_m, 8), bp))
    while bp % tm:
        tm -= 8
    if bp // tm < 2:                  # ensure both v7x TensorCores get work
        tm = max(8, (bp // 2) // 8 * 8)
        while bp % tm:
            tm -= 8
    return tm, bp, bp // tm


def qnetwork_forward(state, kp, *, tile_m=2048, out_dtype=jnp.float32):
    """Forward pass. state: (B, in_dim). Returns (V: (B, 1), A: (B, actions))."""
    B, in_dim = state.shape
    assert in_dim == kp["in_dim"]
    actions = kp["actions"]

    TM, Bp, grid = _choose_tile(B, tile_m)
    x = state if Bp == B else jnp.pad(state, ((0, Bp - B), (0, 0)))   # <= 7 rows

    def stream(shape):   # batch-streamed block; deeper pipeline on long grids
        kwargs = {"pipeline_mode": pl.Buffered(3)} if grid >= 3 else {}
        return pl.BlockSpec(shape, lambda i: (i, 0), **kwargs)

    def resident(a):     # weight/bias stays VMEM-resident across all grid steps
        return pl.BlockSpec(a.shape, lambda i: (0, 0))

    kernel = functools.partial(_qnet_kernel, v_cols=kp["v_cols"])
    V, A = pl.pallas_call(
        kernel,
        out_shape=(jax.ShapeDtypeStruct((Bp, 1), out_dtype),
                   jax.ShapeDtypeStruct((Bp, actions), out_dtype)),
        grid=(grid,),
        in_specs=[stream((TM, in_dim)),
                  resident(kp["w1"]), resident(kp["b1"]),
                  resident(kp["w2"]), resident(kp["b2"]),
                  resident(kp["w_head"]), resident(kp["b_head"])],
        out_specs=(pl.BlockSpec((TM, 1), lambda i: (i, 0)),
                   pl.BlockSpec((TM, actions), lambda i: (i, 0))),
        compiler_params=pltpu.CompilerParams(
            dimension_semantics=("parallel",),
            vmem_limit_bytes=32 * 1024 * 1024),
    )(x, kp["w1"], kp["b1"], kp["w2"], kp["b2"], kp["w_head"], kp["b_head"])

    if Bp != B:          # only when B % 8 != 0 and B >= 16: trims <= 7 rows
        V, A = V[:B], A[:B]
    return V, A


def init_params(key, in_dim, actions, hidden):
    """Deterministic PyTorch-style uniform(-1/sqrt(fan_in), 1/sqrt(fan_in)) init."""
    h2 = hidden * 2
    ks = jax.random.split(key, 8)

    def lin(kw, kb, fan_in, fan_out):
        bound = 1.0 / jnp.sqrt(jnp.float32(fan_in))
        w = jax.random.uniform(kw, (fan_out, fan_in), jnp.float32, -bound, bound)
        b = jax.random.uniform(kb, (fan_out,), jnp.float32, -bound, bound)
        return w, b

    l1_w, l1_b = lin(ks[0], ks[1], in_dim, h2)
    l2_w, l2_b = lin(ks[2], ks[3], h2, hidden)
    V_w, V_b = lin(ks[4], ks[5], hidden, 1)
    A_w, A_b = lin(ks[6], ks[7], hidden, actions)
    return dict(l1_w=l1_w, l1_b=l1_b, l2_w=l2_w, l2_b=l2_b,
                V_w=V_w, V_b=V_b, A_w=A_w, A_b=A_b)


def reference_forward(state, p):
    hp = jax.lax.Precision.HIGHEST   # full-f32 XLA matmuls for a clean baseline
    p1 = jnp.maximum(jnp.dot(state, p["l1_w"].T, precision=hp) + p["l1_b"], 0.0)
    p2 = jnp.maximum(jnp.dot(p1, p["l2_w"].T, precision=hp) + p["l2_b"], 0.0)
    V = jnp.dot(p2, p["V_w"].T, precision=hp) + p["V_b"]
    A = jnp.dot(p2, p["A_w"].T, precision=hp) + p["A_b"]
    return V, A


if __name__ == "__main__":
    key = jax.random.PRNGKey(0)
    k_param, k_state = jax.random.split(key)

    batch, in_dim, actions, hidden = 8, 16, 4, 32
    params = init_params(k_param, in_dim, actions, hidden)
    state = jax.random.normal(k_state, (batch, in_dim), jnp.float32)

    V_ref, A_ref = reference_forward(state, params)

    # f32-weight path. Tolerance is tight enough to catch any wiring/layout bug
    # while remaining robust to MXU f32 matmul pass rounding.
    kp_f32 = prepare_params(params, jnp.float32)
    V, A = jax.block_until_ready(qnetwork_forward(state, kp_f32))
    assert V.shape == (batch, 1) and A.shape == (batch, actions)
    assert jnp.allclose(V, V_ref, atol=2e-2, rtol=2e-2), "V mismatch vs reference (f32)"
    assert jnp.allclose(A, A_ref, atol=2e-2, rtol=2e-2), "A mismatch vs reference (f32)"

    # bf16-weight / bf16-output fast path (MXU-native on v5e/v6e/v7x), f32 accumulation.
    kp_bf16 = prepare_params(params, jnp.bfloat16)
    Vb, Ab = jax.block_until_ready(
        qnetwork_forward(state, kp_bf16, out_dtype=jnp.bfloat16))
    assert Vb.shape == (batch, 1) and Ab.shape == (batch, actions)
    assert jnp.allclose(Vb.astype(jnp.float32), V_ref, atol=1e-1, rtol=1e-1), \
        "V mismatch vs reference (bf16)"
    assert jnp.allclose(Ab.astype(jnp.float32), A_ref, atol=1e-1, rtol=1e-1), \
        "A mismatch vs reference (bf16)"

    print("KERNEL_OK")
</pallas_src>

<mosaic_0001>
module attributes {stable_mosaic.version = 11 : i64} {
  func.func @_qnet_kernel(%arg0: i32, %arg1: memref<8x16xf32, #tpu.memory_space<vmem>>, %arg2: memref<16x128xf32, #tpu.memory_space<vmem>>, %arg3: memref<1x128xf32, #tpu.memory_space<vmem>>, %arg4: memref<128x128xf32, #tpu.memory_space<vmem>>, %arg5: memref<1x128xf32, #tpu.memory_space<vmem>>, %arg6: memref<128x256xf32, #tpu.memory_space<vmem>>, %arg7: memref<1x256xf32, #tpu.memory_space<vmem>>, %arg8: memref<8x1xf32, #tpu.memory_space<vmem>>, %arg9: memref<8x4xf32, #tpu.memory_space<vmem>>) attributes {dimension_semantics = [#tpu.dimension_semantics<parallel>], iteration_bounds = array<i64: 1>, scalar_prefetch = 0 : i64, scratch_operands = 0 : i64, tpu.core_type = #tpu.core_type<tc>, window_params = [{transform_indices = @transform_0, window_bounds = array<i64: 8, 16>}, {pipeline_mode = #tpu.pipeline_mode<synchronous>, transform_indices = @transform_1, window_bounds = array<i64: 16, 128>}, {pipeline_mode = #tpu.pipeline_mode<synchronous>, transform_indices = @transform_2, window_bounds = array<i64: 1, 128>}, {pipeline_mode = #tpu.pipeline_mode<synchronous>, transform_indices = @transform_3, window_bounds = array<i64: 128, 128>}, {pipeline_mode = #tpu.pipeline_mode<synchronous>, transform_indices = @transform_4, window_bounds = array<i64: 1, 128>}, {pipeline_mode = #tpu.pipeline_mode<synchronous>, transform_indices = @transform_5, window_bounds = array<i64: 128, 256>}, {pipeline_mode = #tpu.pipeline_mode<synchronous>, transform_indices = @transform_6, window_bounds = array<i64: 1, 256>}, {transform_indices = @transform_7, window_bounds = array<i64: 8, 1>}, {transform_indices = @transform_8, window_bounds = array<i64: 8, 4>}]} {
    %c0 = arith.constant 0 : index
    %c0_0 = arith.constant 0 : index
    %0 = vector.load %arg1[%c0, %c0_0] : memref<8x16xf32, #tpu.memory_space<vmem>>, vector<8x16xf32>
    %c0_1 = arith.constant 0 : index
    %c0_2 = arith.constant 0 : index
    %1 = vector.load %arg2[%c0_1, %c0_2] : memref<16x128xf32, #tpu.memory_space<vmem>>, vector<16x128xf32>
    %cst = arith.constant dense<0.000000e+00> : vector<8x128xf32>
    %2 = tpu.matmul %0, %1, %cst {dimension_numbers = #tpu.dot_dimension_numbers<[1], [0], [0], [1], [0, 0, 1, 1], [], []>} : vector<8x16xf32>, vector<16x128xf32>, vector<8x128xf32> -> vector<8x128xf32>
    %c0_3 = arith.constant 0 : index
    %c0_4 = arith.constant 0 : index
    %3 = vector.load %arg3[%c0_3, %c0_4] : memref<1x128xf32, #tpu.memory_space<vmem>>, vector<1x128xf32>
    %4 = vector.broadcast %3 : vector<1x128xf32> to vector<8x128xf32>
    %5 = arith.addf %2, %4 : vector<8x128xf32>
    %cst_5 = arith.constant 0.000000e+00 : f32
    %6 = vector.broadcast %cst_5 : f32 to vector<8x128xf32>
    %7 = arith.maximumf %5, %6 : vector<8x128xf32>
    %c0_6 = arith.constant 0 : index
    %c0_7 = arith.constant 0 : index
    %8 = vector.load %arg4[%c0_6, %c0_7] : memref<128x128xf32, #tpu.memory_space<vmem>>, vector<128x128xf32>
    %cst_8 = arith.constant dense<0.000000e+00> : vector<8x128xf32>
    %9 = tpu.matmul %7, %8, %cst_8 {dimension_numbers = #tpu.dot_dimension_numbers<[1], [0], [0], [1], [0, 0, 1, 1], [], []>} : vector<8x128xf32>, vector<128x128xf32>, vector<8x128xf32> -> vector<8x128xf32>
    %c0_9 = arith.constant 0 : index
    %c0_10 = arith.constant 0 : index
    %10 = vector.load %arg5[%c0_9, %c0_10] : memref<1x128xf32, #tpu.memory_space<vmem>>, vector<1x128xf32>
    %11 = vector.broadcast %10 : vector<1x128xf32> to vector<8x128xf32>
    %12 = arith.addf %9, %11 : vector<8x128xf32>
    %cst_11 = arith.constant 0.000000e+00 : f32
    %13 = vector.broadcast %cst_11 : f32 to vector<8x128xf32>
    %14 = arith.maximumf %12, %13 : vector<8x128xf32>
    %c0_12 = arith.constant 0 : index
    %c0_13 = arith.constant 0 : index
    %15 = vector.load %arg6[%c0_12, %c0_13] : memref<128x256xf32, #tpu.memory_space<vmem>>, vector<128x256xf32>
    %cst_14 = arith.constant dense<0.000000e+00> : vector<8x256xf32>
    %16 = tpu.matmul %14, %15, %cst_14 {dimension_numbers = #tpu.dot_dimension_numbers<[1], [0], [0], [1], [0, 0, 1, 1], [], []>} : vector<8x128xf32>, vector<128x256xf32>, vector<8x256xf32> -> vector<8x256xf32>
    %c0_15 = arith.constant 0 : index
    %c0_16 = arith.constant 0 : index
    %17 = vector.load %arg7[%c0_15, %c0_16] : memref<1x256xf32, #tpu.memory_space<vmem>>, vector<1x256xf32>
    %18 = vector.broadcast %17 : vector<1x256xf32> to vector<8x256xf32>
    %19 = arith.addf %16, %18 : vector<8x256xf32>
    %20 = vector.extract_strided_slice %19 {offsets = [0, 0], sizes = [8, 1], strides = [1, 1]} : vector<8x256xf32> to vector<8x1xf32>
    %c0_17 = arith.constant 0 : index
    %c0_18 = arith.constant 0 : index
    %21 = vector.load %arg8[%c0_17, %c0_18] : memref<8x1xf32, #tpu.memory_space<vmem>>, vector<8x1xf32>
    tpu.vector_store %arg8[%c0_17, %c0_18], %20 {strides = array<i32>} : memref<8x1xf32, #tpu.memory_space<vmem>>, vector<8x1xf32>,
    %22 = vector.extract_strided_slice %19 {offsets = [0, 128], sizes = [8, 4], strides = [1, 1]} : vector<8x256xf32> to vector<8x4xf32>
    %c0_19 = arith.constant 0 : index
    %c0_20 = arith.constant 0 : index
    %23 = vector.load %arg9[%c0_19, %c0_20] : memref<8x4xf32, #tpu.memory_space<vmem>>, vector<8x4xf32>
    tpu.vector_store %arg9[%c0_19, %c0_20], %22 {strides = array<i32>} : memref<8x4xf32, #tpu.memory_space<vmem>>, vector<8x4xf32>,
    return
  }
  func.func @transform_0(%arg0: i32) -> (i32, i32) {
    %c0_i32 = arith.constant 0 : i32
    %c0_i32_0 = arith.constant 0 : i32
    return %arg0, %c0_i32 : i32, i32
  }
  func.func @transform_1(%arg0: i32) -> (i32, i32) {
    %c0_i32 = arith.constant 0 : i32
    %c0_i32_0 = arith.constant 0 : i32
    %c0_i32_1 = arith.constant 0 : i32
    return %c0_i32, %c0_i32_0 : i32, i32
  }
  func.func @transform_2(%arg0: i32) -> (i32, i32) {
    %c0_i32 = arith.constant 0 : i32
    %c0_i32_0 = arith.constant 0 : i32
    %c0_i32_1 = arith.constant 0 : i32
    return %c0_i32, %c0_i32_0 : i32, i32
  }
  func.func @transform_3(%arg0: i32) -> (i32, i32) {
    %c0_i32 = arith.constant 0 : i32
    %c0_i32_0 = arith.constant 0 : i32
    %c0_i32_1 = arith.constant 0 : i32
    return %c0_i32, %c0_i32_0 : i32, i32
  }
  func.func @transform_4(%arg0: i32) -> (i32, i32) {
    %c0_i32 = arith.constant 0 : i32
    %c0_i32_0 = arith.constant 0 : i32
    %c0_i32_1 = arith.constant 0 : i32
    return %c0_i32, %c0_i32_0 : i32, i32
  }
  func.func @transform_5(%arg0: i32) -> (i32, i32) {
    %c0_i32 = arith.constant 0 : i32
    %c0_i32_0 = arith.constant 0 : i32
    %c0_i32_1 = arith.constant 0 : i32
    return %c0_i32, %c0_i32_0 : i32, i32
  }
  func.func @transform_6(%arg0: i32) -> (i32, i32) {
    %c0_i32 = arith.constant 0 : i32
    %c0_i32_0 = arith.constant 0 : i32
    %c0_i32_1 = arith.constant 0 : i32
    return %c0_i32, %c0_i32_0 : i32, i32
  }
  func.func @transform_7(%arg0: i32) -> (i32, i32) {
    %c0_i32 = arith.constant 0 : i32
    %c0_i32_0 = arith.constant 0 : i32
    return %arg0, %c0_i32 : i32, i32
  }
  func.func @transform_8(%arg0: i32) -> (i32, i32) {
    %c0_i32 = arith.constant 0 : i32
    %c0_i32_0 = arith.constant 0 : i32
    return %arg0, %c0_i32 : i32, i32
  }
}

</mosaic_0001>

<llo_original>
// kernel: tpu_custom_call.1
$region0: #{tpu_custom_call.1}
  #allocation0 [shape = 'u32[]', space=smem, size = 0x4, offset = 0x4, fixed_abs, tag = 'smem constant byte address 0x4 - core index']
  #allocation1 [shape = 'u32[144,128]{1,0:T(1,128)}', space=vmem, size = 0x12000, scoped, tag = 'internal scratch']
  %s0 = inlined_call_operand.hbm [shape: f32[8,16], index: 0, kind: input, shape index: {}]
  %s1 = inlined_call_operand.hbm [shape: f32[16,128], index: 1, kind: input, shape index: {}]
  %s2 = inlined_call_operand.vmem [shape: f32[1,128], index: 2, kind: input, shape index: {}]
  %s3 = inlined_call_operand.hbm [shape: f32[128,128], index: 3, kind: input, shape index: {}]
  %s4 = inlined_call_operand.vmem [shape: f32[1,128], index: 4, kind: input, shape index: {}]
  %s5 = inlined_call_operand.hbm [shape: f32[128,256], index: 5, kind: input, shape index: {}]
  %s6 = inlined_call_operand.vmem [shape: f32[1,256], index: 6, kind: input, shape index: {}]
  %s7 = inlined_call_operand.vmem [shape: f32[8,1], index: 7, kind: output, shape index: {0}]
  %s8 = inlined_call_operand.vmem [shape: f32[8,4], index: 8, kind: output, shape index: {1}]
  %9 = xla_tuple %s7, %s8
  %s10 = sld [smem:[#allocation0]]
  $region62: #{tpu_custom_call.1} parent=0
    _
  %s12 = ssub.s32 1, %s10
  %s13 = scalar_select 0, %s12, %s10
  $region1: #{tpu_custom_call.1} parent=0
    #allocation2 [shape = 'u8[4096]{0}', space=vmem, size = 0x1000, scoped, tag = 'input window, operand 0, single buffered']
    #allocation3 [shape = 's32[1]{0}', space=sflag, size = 0x4, scoped, tag = 'scoped memory for tpu_custom_call.1']
    #allocation4 [shape = 'u8[8192]{0}', space=vmem, size = 0x2000, scoped, tag = 'input window, operand 1, single buffered']
    #allocation5 [shape = 's32[1]{0}', space=sflag, size = 0x4, scoped, tag = 'scoped memory for tpu_custom_call.1']
    #allocation6 [shape = 'u8[65536]{0}', space=vmem, size = 0x10000, scoped, tag = 'input window, operand 3, single buffered']
    #allocation7 [shape = 'u8[131072]{0}', space=vmem, size = 0x20000, scoped, tag = 'input window, operand 5, single buffered']
    #allocation8 [shape = 's32[1]{0}', space=sflag, size = 0x4, scoped, tag = 'scoped memory for tpu_custom_call.1']
    %14 = vsyncpa [#allocation3], 0
    %15 = vsyncpa [#allocation5], 0
    %16 = vsyncpa [#allocation8], 0
    // Predicated region
    $region2: #{tpu_custom_call.1} parent=1 // pred_check
      _
    $region3: #{tpu_custom_call.1} parent=1 // pred_check_branch
      %18 = sbr.rel (0) target = $region5
    $region4: #{tpu_custom_call.1} parent=1 // pred_region
      %s20 = ssub.s32 128, 128
      %21 = vsyncadd [#allocation3], %s20
      %s23 = sshll.u32 [#allocation2], 4
      %s24 = int_to_ptr.vmem [resolvable:$true] %s23
      %26 = dma.hbm_to_vmem [thread:$0]  %s0, 128, %s24, [#allocation3]
    $region5: #{tpu_custom_call.1} parent=1 // pred_fallthru
      _
    // Predicated region
    $region6: #{tpu_custom_call.1} parent=1 // pred_check
      _
    $region7: #{tpu_custom_call.1} parent=1 // pred_check_branch
      %28 = sbr.rel (0) target = $region9
    $region8: #{tpu_custom_call.1} parent=1 // pred_region
      %s30 = ssub.s32 256, 256
      %31 = vsyncadd [#allocation5], %s30
      %s32 = sshll.u32 [#allocation4], 4
      %s33 = int_to_ptr.vmem [resolvable:$true] %s32
      %38 = dma.hbm_to_vmem [thread:$0]  %s1, 256, %s33, [#allocation5], 128, 128, 8
    $region9: #{tpu_custom_call.1} parent=1 // pred_fallthru
      _
    // Predicated region
    $region10: #{tpu_custom_call.1} parent=1 // pred_check
      _
    $region11: #{tpu_custom_call.1} parent=1 // pred_check_branch
      %40 = sbr.rel (0) target = $region13
    $region12: #{tpu_custom_call.1} parent=1 // pred_region
      _
    $region13: #{tpu_custom_call.1} parent=1 // pred_fallthru
      _
    // Predicated region
    $region14: #{tpu_custom_call.1} parent=1 // pred_check
      _
    $region15: #{tpu_custom_call.1} parent=1 // pred_check_branch
      %42 = sbr.rel (0) target = $region17
    $region16: #{tpu_custom_call.1} parent=1 // pred_region
      %s44 = ssub.s32 2048, 2048
      %45 = vsyncadd [#allocation5], %s44
      %s46 = sshll.u32 [#allocation6], 4
      %s47 = int_to_ptr.vmem [resolvable:$true] %s46
      %52 = dma.hbm_to_vmem [thread:$0]  %s3, 2048, %s47, [#allocation5], 128, 128, 8
    $region17: #{tpu_custom_call.1} parent=1 // pred_fallthru
      _
    // Predicated region
    $region18: #{tpu_custom_call.1} parent=1 // pred_check
      _
    $region19: #{tpu_custom_call.1} parent=1 // pred_check_branch
      %54 = sbr.rel (0) target = $region21
    $region20: #{tpu_custom_call.1} parent=1 // pred_region
      _
    $region21: #{tpu_custom_call.1} parent=1 // pred_fallthru
      _
    // Predicated region
    $region22: #{tpu_custom_call.1} parent=1 // pred_check
      _
    $region23: #{tpu_custom_call.1} parent=1 // pred_check_branch
      %56 = sbr.rel (0) target = $region25
    $region24: #{tpu_custom_call.1} parent=1 // pred_region
      %s58 = ssub.s32 4096, 4096
      %59 = vsyncadd [#allocation8], %s58
      %s60 = sshll.u32 [#allocation7], 4
      %s61 = int_to_ptr.vmem [resolvable:$true] %s60
      %66 = dma.hbm_to_vmem [thread:$0]  %s5, 4096, %s61, [#allocation8], 256, 256, 16
    $region25: #{tpu_custom_call.1} parent=1 // pred_fallthru
      _
    // Predicated region
    $region26: #{tpu_custom_call.1} parent=1 // pred_check
      _
    $region27: #{tpu_custom_call.1} parent=1 // pred_check_branch
      %68 = sbr.rel (0) target = $region29
    $region28: #{tpu_custom_call.1} parent=1 // pred_region
      _
    $region29: #{tpu_custom_call.1} parent=1 // pred_fallthru
      _
    // Predicated region
    $region30: #{tpu_custom_call.1} parent=1 // pred_check
      _
    $region31: #{tpu_custom_call.1} parent=1 // pred_check_branch
      %70 = sbr.rel (0) target = $region33
    $region32: #{tpu_custom_call.1} parent=1 // pred_region
      %71 = dma.done [#allocation3], 128
    $region33: #{tpu_custom_call.1} parent=1 // pred_fallthru
      _
    // Predicated region
    $region34: #{tpu_custom_call.1} parent=1 // pred_check
      _
    $region35: #{tpu_custom_call.1} parent=1 // pred_check_branch
      %73 = sbr.rel (0) target = $region37
    $region36: #{tpu_custom_call.1} parent=1 // pred_region
      %74 = dma.done [#allocation5], 256
    $region37: #{tpu_custom_call.1} parent=1 // pred_fallthru
      _
    // Predicated region
    $region38: #{tpu_custom_call.1} parent=1 // pred_check
      _
    $region39: #{tpu_custom_call.1} parent=1 // pred_check_branch
      %76 = sbr.rel (0) target = $region41
    $region40: #{tpu_custom_call.1} parent=1 // pred_region
      %77 = dma.done [#allocation5], 2048
    $region41: #{tpu_custom_call.1} parent=1 // pred_fallthru
      _
    // Predicated region
    $region42: #{tpu_custom_call.1} parent=1 // pred_check
      _
    $region43: #{tpu_custom_call.1} parent=1 // pred_check_branch
      %79 = sbr.rel (0) target = $region45
    $region44: #{tpu_custom_call.1} parent=1 // pred_region
      %80 = dma.done [#allocation8], 4096
    $region45: #{tpu_custom_call.1} parent=1 // pred_fallthru
      _
    %v81 = vld [vmem:[#allocation2] sm:$0xff]
    %v82 = vld [vmem:[#allocation4] sm:$0xff]
    %v83 = vld [vmem:[#allocation4 + $0x8] sm:$0xff]
    %v84 = vld [vmem:[%s2] sm:$0x1]
    %v86 = vlaneseq
    %v87 = vshrl.u32 %v86, 7
    %v88 = vsub.s32 0, %v87
    %v89 = vrot.slane %v84, %v88
    %vm91 = vcmask 130048
    %v93 = vsel %vm91, %v81, 0
    %95 = vmatprep.subr.mxu0 0.0
    %96 = vmatpush1.msra.mxu0 0.0
    %97 = vmatprep.subr.mxu0 0.0
    %98 = vmatpush1.msra.mxu0 0.0
    %99 = vmatprep.subr.mxu0 0.0
    %100 = vmatpush1.msra.mxu0 0.0
    %101 = vmatprep.subr.mxu0 0.0
    %102 = vmatpush1.msra.mxu0 0.0
    %103 = vmatprep.subr.mxu0 0.0
    %104 = vmatpush1.msra.mxu0 0.0
    %105 = vmatprep.subr.mxu0 0.0
    %106 = vmatpush1.msra.mxu0 0.0
    %107 = vmatprep.subr.mxu0 0.0
    %108 = vmatpush1.msra.mxu0 0.0
    %109 = vmatprep.subr.mxu0 0.0
    %110 = vmatpush1.msra.mxu0 0.0
    %111 = vmatprep.subr.mxu0 0.0
    %112 = vmatpush1.msra.mxu0 0.0
    %113 = vmatprep.subr.mxu0 0.0
    %114 = vmatpush1.msra.mxu0 0.0
    %115 = vmatprep.subr.mxu0 0.0
    %116 = vmatpush1.msra.mxu0 0.0
    %117 = vmatprep.subr.mxu0 0.0
    %118 = vmatpush1.msra.mxu0 0.0
    %119 = vmatprep.subr.mxu0 0.0
    %120 = vmatpush1.msra.mxu0 0.0
    %121 = vmatprep.subr.mxu0 0.0
    %122 = vmatpush1.msra.mxu0 0.0
    %123 = vmatprep.subr.mxu0 0.0
    %124 = vmatpush1.msra.mxu0 %v83
    %125 = vmatprep.subr.mxu0 0.0
    %126 = vmatpush1.msra.mxu0 %v82
    %127 = vmatprep.subr.mxu0 0.0
    %128 = vmatpush2.msra.mxu0 0.0
    %129 = vmatprep.subr.mxu0 0.0
    %130 = vmatpush2.msra.mxu0 0.0
    %131 = vmatprep.subr.mxu0 0.0
    %132 = vmatpush2.msra.mxu0 0.0
    %133 = vmatprep.subr.mxu0 0.0
    %134 = vmatpush2.msra.mxu0 0.0
    %135 = vmatprep.subr.mxu0 0.0
    %136 = vmatpush2.msra.mxu0 0.0
    %137 = vmatprep.subr.mxu0 0.0
    %138 = vmatpush2.msra.mxu0 0.0
    %139 = vmatprep.subr.mxu0 0.0
    %140 = vmatpush2.msra.mxu0 0.0
    %141 = vmatprep.subr.mxu0 0.0
    %142 = vmatpush2.msra.mxu0 0.0
    %143 = vmatprep.subr.mxu0 0.0
    %144 = vmatpush2.msra.mxu0 0.0
    %145 = vmatprep.subr.mxu0 0.0
    %146 = vmatpush2.msra.mxu0 0.0
    %147 = vmatprep.subr.mxu0 0.0
    %148 = vmatpush2.msra.mxu0 0.0
    %149 = vmatprep.subr.mxu0 0.0
    %150 = vmatpush2.msra.mxu0 0.0
    %151 = vmatprep.subr.mxu0 0.0
    %152 = vmatpush2.msra.mxu0 0.0
    %153 = vmatprep.subr.mxu0 0.0
    %154 = vmatpush2.msra.mxu0 0.0
    %155 = vmatprep.subr.mxu0 0.0
    %156 = vmatpush2.msra.mxu0 0.0
    %157 = vmatprep.subr.mxu0 0.0
    %158 = vmatpush2.msra.mxu0 0.0
    %159 = vmatprep.mubr.f32.mxu0 0.0
    %160 = vmatmul.mubr.f32.gmra.mxu0 %v93
    %v161 = vpop.f32.mrf.mxu0
    %v162 = vadd.f32 %v89, %v161
    %v163 = vpop.f32.mrf.mxu0
    %164 = vdwg.mxu0
    %v165 = vmax.f32 %v162, 0.0
    %v166 = vld [vmem:[#allocation6] sm:$0xff]
    %v167 = vld [vmem:[#allocation6 + $0x8] sm:$0xff]
    %v168 = vld [vmem:[#allocation6 + $0x10] sm:$0xff]
    %v169 = vld [vmem:[#allocation6 + $0x18] sm:$0xff]
    %v170 = vld [vmem:[#allocation6 + $0x20] sm:$0xff]
    %v171 = vld [vmem:[#allocation6 + $0x28] sm:$0xff]
    %v172 = vld [vmem:[#allocation6 + $0x30] sm:$0xff]
    %v173 = vld [vmem:[#allocation6 + $0x38] sm:$0xff]
    %v174 = vld [vmem:[#allocation6 + $0x40] sm:$0xff]
    %v175 = vld [vmem:[#allocation6 + $0x48] sm:$0xff]
    %v176 = vld [vmem:[#allocation6 + $0x50] sm:$0xff]
    %v177 = vld [vmem:[#allocation6 + $0x58] sm:$0xff]
    %v178 = vld [vmem:[#allocation6 + $0x60] sm:$0xff]
    %v179 = vld [vmem:[#allocation6 + $0x68] sm:$0xff]
    %v180 = vld [vmem:[#allocation6 + $0x70] sm:$0xff]
    %v181 = vld [vmem:[#allocation6 + $0x78] sm:$0xff]
    %v182 = vld [vmem:[%s4] sm:$0x1]
    %v184 = vlaneseq
    %v185 = vshrl.u32 %v184, 7
    %v186 = vsub.s32 0, %v185
    %v187 = vrot.slane %v182, %v186
    %189 = vmatprep.subr.mxu0 0.0
    %190 = vmatpush1.msra.mxu0 %v181
    %191 = vmatprep.subr.mxu0 0.0
    %192 = vmatpush1.msra.mxu0 %v180
    %193 = vmatprep.subr.mxu0 0.0
    %194 = vmatpush1.msra.mxu0 %v179
    %195 = vmatprep.subr.mxu0 0.0
    %196 = vmatpush1.msra.mxu0 %v178
    %197 = vmatprep.subr.mxu0 0.0
    %198 = vmatpush1.msra.mxu0 %v177
    %199 = vmatprep.subr.mxu0 0.0
    %200 = vmatpush1.msra.mxu0 %v176
    %201 = vmatprep.subr.mxu0 0.0
    %202 = vmatpush1.msra.mxu0 %v175
    %203 = vmatprep.subr.mxu0 0.0
    %204 = vmatpush1.msra.mxu0 %v174
    %205 = vmatprep.subr.mxu0 0.0
    %206 = vmatpush1.msra.mxu0 %v173
    %207 = vmatprep.subr.mxu0 0.0
    %208 = vmatpush1.msra.mxu0 %v172
    %209 = vmatprep.subr.mxu0 0.0
    %210 = vmatpush1.msra.mxu0 %v171
    %211 = vmatprep.subr.mxu0 0.0
    %212 = vmatpush1.msra.mxu0 %v170
    %213 = vmatprep.subr.mxu0 0.0
    %214 = vmatpush1.msra.mxu0 %v169
    %215 = vmatprep.subr.mxu0 0.0
    %216 = vmatpush1.msra.mxu0 %v168
    %217 = vmatprep.subr.mxu0 0.0
    %218 = vmatpush1.msra.mxu0 %v167
    %219 = vmatprep.subr.mxu0 0.0
    %220 = vmatpush1.msra.mxu0 %v166
    %221 = vmatprep.subr.mxu0 0.0
    %222 = vmatpush2.msra.mxu0 0.0
    %223 = vmatprep.subr.mxu0 0.0
    %224 = vmatpush2.msra.mxu0 0.0
    %225 = vmatprep.subr.mxu0 0.0
    %226 = vmatpush2.msra.mxu0 0.0
    %227 = vmatprep.subr.mxu0 0.0
    %228 = vmatpush2.msra.mxu0 0.0
    %229 = vmatprep.subr.mxu0 0.0
    %230 = vmatpush2.msra.mxu0 0.0
    %231 = vmatprep.subr.mxu0 0.0
    %232 = vmatpush2.msra.mxu0 0.0
    %233 = vmatprep.subr.mxu0 0.0
    %234 = vmatpush2.msra.mxu0 0.0
    %235 = vmatprep.subr.mxu0 0.0
    %236 = vmatpush2.msra.mxu0 0.0
    %237 = vmatprep.subr.mxu0 0.0
    %238 = vmatpush2.msra.mxu0 0.0
    %239 = vmatprep.subr.mxu0 0.0
    %240 = vmatpush2.msra.mxu0 0.0
    %241 = vmatprep.subr.mxu0 0.0
    %242 = vmatpush2.msra.mxu0 0.0
    %243 = vmatprep.subr.mxu0 0.0
    %244 = vmatpush2.msra.mxu0 0.0
    %245 = vmatprep.subr.mxu0 0.0
    %246 = vmatpush2.msra.mxu0 0.0
    %247 = vmatprep.subr.mxu0 0.0
    %248 = vmatpush2.msra.mxu0 0.0
    %249 = vmatprep.subr.mxu0 0.0
    %250 = vmatpush2.msra.mxu0 0.0
    %251 = vmatprep.subr.mxu0 0.0
    %252 = vmatpush2.msra.mxu0 0.0
    %253 = vmatprep.mubr.f32.mxu0 0.0
    %254 = vmatmul.mubr.f32.gmra.mxu0 %v165
    %v255 = vpop.f32.mrf.mxu0
    %v256 = vadd.f32 %v187, %v255
    %v257 = vpop.f32.mrf.mxu0
    %258 = vdwg.mxu0
    %v259 = vmax.f32 %v256, 0.0
    %v260 = vld [vmem:[#allocation7] sm:$0xff]
    %v261 = vld [vmem:[#allocation7 + $0x8] sm:$0xff]
    %v262 = vld [vmem:[#allocation7 + $0x10] sm:$0xff]
    %v263 = vld [vmem:[#allocation7 + $0x18] sm:$0xff]
    %v264 = vld [vmem:[#allocation7 + $0x20] sm:$0xff]
    %v265 = vld [vmem:[#allocation7 + $0x28] sm:$0xff]
    %v266 = vld [vmem:[#allocation7 + $0x30] sm:$0xff]
    %v267 = vld [vmem:[#allocation7 + $0x38] sm:$0xff]
    %v268 = vld [vmem:[#allocation7 + $0x40] sm:$0xff]
    %v269 = vld [vmem:[#allocation7 + $0x48] sm:$0xff]
    %v270 = vld [vmem:[#allocation7 + $0x50] sm:$0xff]
    %v271 = vld [vmem:[#allocation7 + $0x58] sm:$0xff]
    %v272 = vld [vmem:[#allocation7 + $0x60] sm:$0xff]
    %v273 = vld [vmem:[#allocation7 + $0x68] sm:$0xff]
    %v274 = vld [vmem:[#allocation7 + $0x70] sm:$0xff]
    %v275 = vld [vmem:[#allocation7 + $0x78] sm:$0xff]
    %v276 = vld [vmem:[#allocation7 + $0x80] sm:$0xff]
    %v277 = vld [vmem:[#allocation7 + $0x88] sm:$0xff]
    %v278 = vld [vmem:[#allocation7 + $0x90] sm:$0xff]
    %v279 = vld [vmem:[#allocation7 + $0x98] sm:$0xff]
    %v280 = vld [vmem:[#allocation7 + $0xa0] sm:$0xff]
    %v281 = vld [vmem:[#allocation7 + $0xa8] sm:$0xff]
    %v282 = vld [vmem:[#allocation7 + $0xb0] sm:$0xff]
    %v283 = vld [vmem:[#allocation7 + $0xb8] sm:$0xff]
    %v284 = vld [vmem:[#allocation7 + $0xc0] sm:$0xff]
    %v285 = vld [vmem:[#allocation7 + $0xc8] sm:$0xff]
    %v286 = vld [vmem:[#allocation7 + $0xd0] sm:$0xff]
    %v287 = vld [vmem:[#allocation7 + $0xd8] sm:$0xff]
    %v288 = vld [vmem:[#allocation7 + $0xe0] sm:$0xff]
    %v289 = vld [vmem:[#allocation7 + $0xe8] sm:$0xff]
    %v290 = vld [vmem:[#allocation7 + $0xf0] sm:$0xff]
    %v291 = vld [vmem:[#allocation7 + $0xf8] sm:$0xff]
    %v292 = vld [vmem:[%s6] sm:$0x3]
    %v294 = vlaneseq
    %v295 = vshrl.u32 %v294, 7
    %v296 = vsub.s32 0, %v295
    %v297 = vrot.slane %v292, %v296
    %v298 = vlaneseq
    %v299 = vshrl.u32 %v298, 7
    %v300 = vsub.s32 1, %v299
    %v301 = vrot.slane %v292, %v300
    %304 = vmatprep.subr.mxu0 %v291
    %305 = vmatpush1.msra.mxu0 %v290
    %306 = vmatprep.subr.mxu0 %v289
    %307 = vmatpush1.msra.mxu0 %v288
    %308 = vmatprep.subr.mxu0 %v287
    %309 = vmatpush1.msra.mxu0 %v286
    %310 = vmatprep.subr.mxu0 %v285
    %311 = vmatpush1.msra.mxu0 %v284
    %312 = vmatprep.subr.mxu0 %v283
    %313 = vmatpush1.msra.mxu0 %v282
    %314 = vmatprep.subr.mxu0 %v281
    %315 = vmatpush1.msra.mxu0 %v280
    %316 = vmatprep.subr.mxu0 %v279
    %317 = vmatpush1.msra.mxu0 %v278
    %318 = vmatprep.subr.mxu0 %v277
    %319 = vmatpush1.msra.mxu0 %v276
    %320 = vmatprep.subr.mxu0 %v275
    %321 = vmatpush1.msra.mxu0 %v274
    %322 = vmatprep.subr.mxu0 %v273
    %323 = vmatpush1.msra.mxu0 %v272
    %324 = vmatprep.subr.mxu0 %v271
    %325 = vmatpush1.msra.mxu0 %v270
    %326 = vmatprep.subr.mxu0 %v269
    %327 = vmatpush1.msra.mxu0 %v268
    %328 = vmatprep.subr.mxu0 %v267
    %329 = vmatpush1.msra.mxu0 %v266
    %330 = vmatprep.subr.mxu0 %v265
    %331 = vmatpush1.msra.mxu0 %v264
    %332 = vmatprep.subr.mxu0 %v263
    %333 = vmatpush1.msra.mxu0 %v262
    %334 = vmatprep.subr.mxu0 %v261
    %335 = vmatpush1.msra.mxu0 %v260
    %336 = vmatprep.subr.mxu0 0.0
    %337 = vmatpush2.msra.mxu0 0.0
    %338 = vmatprep.subr.mxu0 0.0
    %339 = vmatpush2.msra.mxu0 0.0
    %340 = vmatprep.subr.mxu0 0.0
    %341 = vmatpush2.msra.mxu0 0.0
    %342 = vmatprep.subr.mxu0 0.0
    %343 = vmatpush2.msra.mxu0 0.0
    %344 = vmatprep.subr.mxu0 0.0
    %345 = vmatpush2.msra.mxu0 0.0
    %346 = vmatprep.subr.mxu0 0.0
    %347 = vmatpush2.msra.mxu0 0.0
    %348 = vmatprep.subr.mxu0 0.0
    %349 = vmatpush2.msra.mxu0 0.0
    %350 = vmatprep.subr.mxu0 0.0
    %351 = vmatpush2.msra.mxu0 0.0
    %352 = vmatprep.subr.mxu0 0.0
    %353 = vmatpush2.msra.mxu0 0.0
    %354 = vmatprep.subr.mxu0 0.0
    %355 = vmatpush2.msra.mxu0 0.0
    %356 = vmatprep.subr.mxu0 0.0
    %357 = vmatpush2.msra.mxu0 0.0
    %358 = vmatprep.subr.mxu0 0.0
    %359 = vmatpush2.msra.mxu0 0.0
    %360 = vmatprep.subr.mxu0 0.0
    %361 = vmatpush2.msra.mxu0 0.0
    %362 = vmatprep.subr.mxu0 0.0
    %363 = vmatpush2.msra.mxu0 0.0
    %364 = vmatprep.subr.mxu0 0.0
    %365 = vmatpush2.msra.mxu0 0.0
    %366 = vmatprep.subr.mxu0 0.0
    %367 = vmatpush2.msra.mxu0 0.0
    %368 = vmatprep.mubr.f32.mxu0 0.0
    %369 = vmatmul.mubr.f32.gmra.mxu0 %v259
    %v370 = vpop.f32.mrf.mxu0
    %v371 = vadd.f32 %v297, %v370
    %v372 = vpop.f32.mrf.mxu0
    %v373 = vadd.f32 %v301, %v372
    %374 = vdwg.mxu0
    %vm375 = vcmask 7168
    %376 = vst.msk [vmem:[%s7] sm:$0xff] %vm375, %v371
    %vm377 = vcmask 31744
    %378 = vst.msk [vmem:[%s8] sm:$0xff] %vm377, %v373
    // Predicated region
    $region46: #{tpu_custom_call.1} parent=1 // pred_check
      _
    $region47: #{tpu_custom_call.1} parent=1 // pred_check_branch
      %380 = sbr.rel (0) target = $region49
    $region48: #{tpu_custom_call.1} parent=1 // pred_region
      _
    $region49: #{tpu_custom_call.1} parent=1 // pred_fallthru
      _
    // Predicated region
    $region50: #{tpu_custom_call.1} parent=1 // pred_check
      _
    $region51: #{tpu_custom_call.1} parent=1 // pred_check_branch
      %382 = sbr.rel (0) target = $region53
    $region52: #{tpu_custom_call.1} parent=1 // pred_region
      _
    $region53: #{tpu_custom_call.1} parent=1 // pred_fallthru
      _
    // Predicated region
    $region54: #{tpu_custom_call.1} parent=1 // pred_check
      _
    $region55: #{tpu_custom_call.1} parent=1 // pred_check_branch
      %384 = sbr.rel (0) target = $region57
    $region56: #{tpu_custom_call.1} parent=1 // pred_region
      _
    $region57: #{tpu_custom_call.1} parent=1 // pred_fallthru
      _
    // Predicated region
    $region58: #{tpu_custom_call.1} parent=1 // pred_check
      _
    $region59: #{tpu_custom_call.1} parent=1 // pred_check_branch
      %386 = sbr.rel (0) target = $region61
    $region60: #{tpu_custom_call.1} parent=1 // pred_region
      _
    $region61: #{tpu_custom_call.1} parent=1 // pred_fallthru
      _
    %387 = vsyncpa [#allocation3], 1
    %388 = vsyncpa [#allocation5], 1
    %389 = vsyncpa [#allocation8], 1

</llo_original>
